<compile_context>
chip_gen: v6e
topology: v6e:2x2x1
jax: 0.10.0
libtpu: 0.0.40
codegen_flags: <defaults>
</compile_context>

<pallas_src>
import functools

import jax
import jax.numpy as jnp
from jax.experimental import pallas as pl
from jax.experimental.pallas import tpu as pltpu


def _graph_aggr_kernel(h_ref, wf_ref, bf_ref, wg_ref, bg_ref, o_ref, *, idx):
    # h_ref : (G*idx, ndim)  G graphs' nodes (graph-major, node-minor)
    # wf_ref: (ndim, sdim)   f_m weight, (in, out) layout
    # bf_ref: (1, sdim)      f_m bias
    # wg_ref: (ndim, 1)      g_m weight as a column vector (MXU matvec)
    # bg_ref: (1,) in SMEM   g_m bias (scalar)
    # o_ref : (G, sdim)
    rows, ndim = h_ref.shape
    G = rows // idx

    h = h_ref[...]                                  # native dtype (f32 / bf16)
    wg = wg_ref[...].astype(h.dtype)                # (ndim, 1)

    # Gate logits on the (otherwise idle) MXU, accumulated in f32.  No f32
    # copy of the whole h slab is materialized.
    logits = jnp.dot(h, wg, preferred_element_type=jnp.float32)   # (rows, 1)
    g = jax.nn.sigmoid(logits + bg_ref[0])                        # (rows, 1) f32

    # Gated node features stay in the input dtype (bf16 remains lane-packed on
    # the VPU); segmented (per-graph) pooling accumulates in f32.
    gh = h * g.astype(h.dtype)                                    # (rows, ndim)
    p = jnp.sum(gh.reshape(G, idx, ndim), axis=1,
                dtype=jnp.float32)                                # (G, ndim)
    s = jnp.sum(g.reshape(G, idx, 1), axis=1)                     # (G, 1)

    # One small MXU matmul per block; bias is scaled by the per-graph gate sum.
    out = jnp.dot(p, wf_ref[...].astype(jnp.float32),
                  preferred_element_type=jnp.float32)             # (G, sdim)
    out = out + s * bf_ref[...].astype(jnp.float32)
    o_ref[...] = out.astype(o_ref.dtype)


def _tpu_budgets():
    """(h-block byte budget, scoped-VMEM limit bytes) for the local chip."""
    vmem = 128 << 20
    try:
        info = pltpu.get_tpu_info()
        vmem = int(getattr(info, "vmem_capacity_bytes", vmem)) or vmem
    except Exception:
        pass  # non-TPU / older API: assume a 128 MiB-VMEM part
    # Block budget: big enough to amortize the ~0.35 us per-step overhead,
    # small enough that 2x double-buffered input + f32 temps + resident
    # weights + output sit comfortably under the scoped VMEM limit.
    # -> ~8 MiB on 128 MiB parts (v5e/v6e), ~4 MiB on 64 MiB parts (v7x).
    block_budget = max(2 << 20, min(8 << 20, vmem // 16))
    vmem_limit = min(int(vmem * 3 // 4), 96 << 20)
    return block_budget, vmem_limit


def _choose_group(B, idx, ndim, itemsize, max_block_bytes, min_steps=4):
    """Graphs-per-block G (always a multiple of 8).

    Targets an h slab of roughly `max_block_bytes` and at least `min_steps`
    grid steps (>= 2 per TensorCore on 2-TC parts so prefetch/compute overlap
    survives megacore sharding).  Prefers an exact divisor of B so the wrapper
    does not need to pad h; otherwise the wrapper pads B up to a multiple of G.
    """
    bytes_per_graph = max(1, idx * ndim * itemsize)
    g_budget = max(1, max_block_bytes // bytes_per_graph)
    g_steps = max(1, (B + min_steps - 1) // min_steps)   # ceil(B / min_steps)
    g = min(g_budget, g_steps)
    # Sublane alignment: G a multiple of 8 keeps the (G*idx, ndim) slab and the
    # (G, sdim) output block 8-aligned (dense, unmasked vst).
    g = max(8, 8 * (g // 8))
    # Prefer an exact divisor of B (avoids an extra XLA pad copy of h).
    for cand in range(g, 7, -8):
        if B % cand == 0:
            return cand
    return g


def graph_aggr_gsum(h, idx, w_f, b_f, w_g, b_g, *, bf16_inputs=False):
    """Pallas forward of GraphAggr with aggr='gsum'.

    h   : (B*idx, ndim) float32   (graph-major, node-minor rows)
    idx : python int, nodes per graph
    w_f : (ndim, sdim), b_f : (sdim,)
    w_g : (ndim, 1),    b_g : (1,)
    bf16_inputs: cast h / weights to bf16 at the call boundary (halves HBM
        traffic on bf16-capable VPUs; accumulation stays f32 in-kernel).
        Ideally store h in bf16 upstream so the cast is not a standalone
        read+write of the full stream.  Keep False when bit-tight f32 accuracy
        is required (e.g. this demo's 1e-5 tolerance check).
    returns (B, sdim) float32
    """
    n_rows, ndim = h.shape
    assert n_rows % idx == 0, "h must hold an integer number of graphs"
    B = n_rows // idx
    sdim = w_f.shape[1]

    in_dtype = jnp.bfloat16 if bf16_inputs else h.dtype
    h_in = h.astype(in_dtype)
    wf_in = w_f.astype(in_dtype)
    bf_in = b_f.reshape(1, sdim).astype(jnp.float32)
    wg_in = w_g.reshape(ndim, 1).astype(in_dtype)   # column vector for MXU
    bg_in = b_g.reshape(1).astype(jnp.float32)      # scalar -> SMEM

    itemsize = jnp.dtype(in_dtype).itemsize
    block_budget, vmem_limit = _tpu_budgets()
    G = _choose_group(B, idx, ndim, itemsize, block_budget)

    # Pad the batch up to a multiple of G.  Pad graphs are all-zero rows; their
    # (garbage-bias) output rows are sliced off below and never read.
    B_pad = ((B + G - 1) // G) * G
    if B_pad != B:
        h_in = jnp.pad(h_in, ((0, (B_pad - B) * idx), (0, 0)))
    grid = (B_pad // G,)

    kernel = functools.partial(_graph_aggr_kernel, idx=idx)

    cost = pl.CostEstimate(
        flops=int(2 * B_pad * idx * ndim          # gate matvec
                  + 3 * B_pad * idx * ndim        # gating + pooling
                  + 2 * B_pad * ndim * sdim       # pooled matmul
                  + 2 * B_pad * sdim),            # bias
        transcendentals=int(B_pad * idx),
        bytes_accessed=int(B_pad * idx * ndim * itemsize   # h
                           + ndim * sdim * itemsize        # w_f
                           + ndim * itemsize               # w_g
                           + (sdim + 1) * 4                # biases
                           + B_pad * sdim * 4),            # output
    )

    out = pl.pallas_call(
        kernel,
        out_shape=jax.ShapeDtypeStruct((B_pad, sdim), jnp.float32),
        grid=grid,
        in_specs=[
            # G graphs' worth of nodes per grid step: a (G*idx, ndim) slab.
            pl.BlockSpec((G * idx, ndim), lambda b: (b, 0)),
            # Parameters: full arrays, same block every step (stay resident).
            pl.BlockSpec((ndim, sdim), lambda b: (0, 0)),
            pl.BlockSpec((1, sdim), lambda b: (0, 0)),
            pl.BlockSpec((ndim, 1), lambda b: (0, 0)),
            # Scalar gate bias: SMEM (a (1,1) VMEM tile would waste a DMA).
            pl.BlockSpec(memory_space=pltpu.MemorySpace.SMEM),
        ],
        out_specs=pl.BlockSpec((G, sdim), lambda b: (b, 0)),
        compiler_params=pltpu.CompilerParams(
            dimension_semantics=("parallel",),
            vmem_limit_bytes=int(vmem_limit),
        ),
        cost_estimate=cost,
    )(h_in, wf_in, bf_in, wg_in, bg_in)

    return out[:B] if B_pad != B else out


def graph_aggr_reference(h, idx, w_f, b_f, w_g, b_g):
    """Plain-JAX reference mirroring the PyTorch forward."""
    h_vG = h @ w_f + b_f
    g_vG = jax.nn.sigmoid(h @ w_g + b_g)
    prod = (h_vG * g_vG).reshape(-1, idx, w_f.shape[1])
    return jnp.sum(prod, axis=1)


if __name__ == "__main__":
    # Small shapes consistent with the module: B graphs, idx nodes/graph,
    # ndim node-feature width, sdim graph-embedding width.
    B, idx, ndim, sdim = 2, 8, 32, 32

    key = jax.random.PRNGKey(0)
    k_h, k_wf, k_bf, k_wg, k_bg = jax.random.split(key, 5)

    # Deterministic synthetic parameters (nn.Linear-shaped, transposed to
    # (in, out) for right-multiplication).
    bound_f = 1.0 / (ndim ** 0.5)
    w_f = jax.random.uniform(k_wf, (ndim, sdim), jnp.float32, -bound_f, bound_f)
    b_f = jax.random.uniform(k_bf, (sdim,), jnp.float32, -bound_f, bound_f)
    w_g = jax.random.uniform(k_wg, (ndim, 1), jnp.float32, -bound_f, bound_f)
    b_g = jax.random.uniform(k_bg, (1,), jnp.float32, -bound_f, bound_f)

    h = jax.random.normal(k_h, (B * idx, ndim), jnp.float32)

    out = graph_aggr_gsum(h, idx, w_f, b_f, w_g, b_g)
    out = jax.block_until_ready(out)

    ref = graph_aggr_reference(h, idx, w_f, b_f, w_g, b_g)
    assert out.shape == (B, sdim)
    assert jnp.allclose(out, ref, atol=1e-5, rtol=1e-5), "mismatch vs reference"

    print("KERNEL_OK")
</pallas_src>

<mosaic_0001>
module attributes {stable_mosaic.version = 11 : i64} {
  func.func @_graph_aggr_kernel(%arg0: i32, %arg1: memref<64x32xf32, #tpu.memory_space<vmem>>, %arg2: memref<32x32xf32, #tpu.memory_space<vmem>>, %arg3: memref<1x32xf32, #tpu.memory_space<vmem>>, %arg4: memref<32x1xf32, #tpu.memory_space<vmem>>, %arg5: memref<1xf32, #tpu.memory_space<smem>>, %arg6: memref<8x32xf32, #tpu.memory_space<vmem>>) attributes {dimension_semantics = [#tpu.dimension_semantics<parallel>], iteration_bounds = array<i64: 1>, scalar_prefetch = 0 : i64, scratch_operands = 0 : i64, tpu.core_type = #tpu.core_type<tc>, window_params = [{transform_indices = @transform_0, window_bounds = array<i64: 64, 32>}, {pipeline_mode = #tpu.pipeline_mode<synchronous>, transform_indices = @transform_1, window_bounds = array<i64: 32, 32>}, {pipeline_mode = #tpu.pipeline_mode<synchronous>, transform_indices = @transform_2, window_bounds = array<i64: 1, 32>}, {pipeline_mode = #tpu.pipeline_mode<synchronous>, transform_indices = @transform_3, window_bounds = array<i64: 32, 1>}, {transform_indices = @transform_4, window_bounds = array<i64: 1>}, {transform_indices = @transform_5, window_bounds = array<i64: 8, 32>}]} {
    %c0 = arith.constant 0 : index
    %c0_0 = arith.constant 0 : index
    %0 = vector.load %arg1[%c0, %c0_0] : memref<64x32xf32, #tpu.memory_space<vmem>>, vector<64x32xf32>
    %c0_1 = arith.constant 0 : index
    %c0_2 = arith.constant 0 : index
    %1 = vector.load %arg4[%c0_1, %c0_2] : memref<32x1xf32, #tpu.memory_space<vmem>>, vector<32x1xf32>
    %cst = arith.constant dense<0.000000e+00> : vector<64x1xf32>
    %2 = tpu.matmul %0, %1, %cst {dimension_numbers = #tpu.dot_dimension_numbers<[1], [0], [0], [1], [0, 0, 1, 1], [], []>} : vector<64x32xf32>, vector<32x1xf32>, vector<64x1xf32> -> vector<64x1xf32>
    %c0_3 = arith.constant 0 : index
    %3 = memref.load %arg5[%c0_3] : memref<1xf32, #tpu.memory_space<smem>>
    %4 = vector.broadcast %3 : f32 to vector<64x1xf32>
    %5 = arith.addf %2, %4 : vector<64x1xf32>
    %6 = arith.negf %5 : vector<64x1xf32>
    %7 = math.exp %6 : vector<64x1xf32>
    %cst_4 = arith.constant 1.000000e+00 : f32
    %8 = vector.broadcast %cst_4 : f32 to vector<64x1xf32>
    %9 = arith.addf %8, %7 : vector<64x1xf32>
    %10 = arith.divf %8, %9 : vector<64x1xf32>
    %11 = vector.broadcast %10 : vector<64x1xf32> to vector<64x32xf32>
    %12 = arith.mulf %0, %11 : vector<64x32xf32>
    %13 = vector.shape_cast %12 : vector<64x32xf32> to vector<8x8x32xf32>
    %cst_5 = arith.constant dense<0.000000e+00> : vector<8x32xf32>
    %14 = vector.multi_reduction <add>, %13, %cst_5 [1] : vector<8x8x32xf32> to vector<8x32xf32>
    %15 = vector.shape_cast %10 : vector<64x1xf32> to vector<8x8x1xf32>
    %cst_6 = arith.constant dense<0.000000e+00> : vector<8x1xf32>
    %16 = vector.multi_reduction <add>, %15, %cst_6 [1] : vector<8x8x1xf32> to vector<8x1xf32>
    %c0_7 = arith.constant 0 : index
    %c0_8 = arith.constant 0 : index
    %17 = vector.load %arg2[%c0_7, %c0_8] : memref<32x32xf32, #tpu.memory_space<vmem>>, vector<32x32xf32>
    %cst_9 = arith.constant dense<0.000000e+00> : vector<8x32xf32>
    %18 = tpu.matmul %14, %17, %cst_9 {dimension_numbers = #tpu.dot_dimension_numbers<[1], [0], [0], [1], [0, 0, 1, 1], [], []>} : vector<8x32xf32>, vector<32x32xf32>, vector<8x32xf32> -> vector<8x32xf32>
    %c0_10 = arith.constant 0 : index
    %c0_11 = arith.constant 0 : index
    %19 = vector.load %arg3[%c0_10, %c0_11] : memref<1x32xf32, #tpu.memory_space<vmem>>, vector<1x32xf32>
    %20 = vector.broadcast %16 : vector<8x1xf32> to vector<8x32xf32>
    %21 = vector.broadcast %19 : vector<1x32xf32> to vector<8x32xf32>
    %22 = arith.mulf %20, %21 : vector<8x32xf32>
    %23 = arith.addf %18, %22 : vector<8x32xf32>
    %c0_12 = arith.constant 0 : index
    %c0_13 = arith.constant 0 : index
    %24 = vector.load %arg6[%c0_12, %c0_13] : memref<8x32xf32, #tpu.memory_space<vmem>>, vector<8x32xf32>
    tpu.vector_store %arg6[%c0_12, %c0_13], %23 {strides = array<i32>} : memref<8x32xf32, #tpu.memory_space<vmem>>, vector<8x32xf32>,
    return
  }
  func.func @transform_0(%arg0: i32) -> (i32, i32) {
    %c0_i32 = arith.constant 0 : i32
    %c0_i32_0 = arith.constant 0 : i32
    return %arg0, %c0_i32 : i32, i32
  }
  func.func @transform_1(%arg0: i32) -> (i32, i32) {
    %c0_i32 = arith.constant 0 : i32
    %c0_i32_0 = arith.constant 0 : i32
    %c0_i32_1 = arith.constant 0 : i32
    return %c0_i32, %c0_i32_0 : i32, i32
  }
  func.func @transform_2(%arg0: i32) -> (i32, i32) {
    %c0_i32 = arith.constant 0 : i32
    %c0_i32_0 = arith.constant 0 : i32
    %c0_i32_1 = arith.constant 0 : i32
    return %c0_i32, %c0_i32_0 : i32, i32
  }
  func.func @transform_3(%arg0: i32) -> (i32, i32) {
    %c0_i32 = arith.constant 0 : i32
    %c0_i32_0 = arith.constant 0 : i32
    %c0_i32_1 = arith.constant 0 : i32
    return %c0_i32, %c0_i32_0 : i32, i32
  }
  func.func @transform_4(%arg0: i32) -> i32 {
    %c0_i32 = arith.constant 0 : i32
    %c0_i32_0 = arith.constant 0 : i32
    return %c0_i32 : i32
  }
  func.func @transform_5(%arg0: i32) -> (i32, i32) {
    %c0_i32 = arith.constant 0 : i32
    %c0_i32_0 = arith.constant 0 : i32
    return %arg0, %c0_i32 : i32, i32
  }
}

</mosaic_0001>

<llo_original>
// kernel: tpu_custom_call.1
$region0: #{tpu_custom_call.1}
  #allocation0 [shape = 'u32[]', space=smem, size = 0x4, offset = 0x4, fixed_abs, tag = 'smem constant byte address 0x4 - core index']
  #allocation1 [shape = 'u32[144,128]{1,0:T(1,128)}', space=vmem, size = 0x12000, scoped, tag = 'internal scratch']
  #allocation2 [shape = 'f32[1]{0:T(128)S(6)}', space=smem, size = 0x200, scoped, tag = 'scoped memory for tpu_custom_call.1']
  %s0 = inlined_call_operand.vmem [shape: f32[64,32], index: 0, kind: input, shape index: {}]
  %s1 = inlined_call_operand.vmem [shape: f32[32,32], index: 1, kind: input, shape index: {}]
  %s2 = inlined_call_operand.vmem [shape: f32[1,32], index: 2, kind: input, shape index: {}]
  %s3 = inlined_call_operand.vmem [shape: f32[32,1], index: 3, kind: input, shape index: {}]
  %s4 = inlined_call_operand.<no memory space> [shape: f32[1], index: 4, kind: input, shape index: {}]
  %s5 = inlined_call_operand.hbm [shape: f32[8,32], index: 5, kind: output, shape index: {}]
  %s6 = sld [smem:[#allocation0]]
  $region30: #{tpu_custom_call.1} parent=0
    _
  %s8 = ssub.s32 1, %s6
  %s9 = scalar_select 0, %s8, %s6
  %10 = sst [smem:[#allocation2]] %s4
  $region1: #{tpu_custom_call.1} parent=0
    #allocation3 [shape = 'u8[4096]{0}', space=vmem, size = 0x1000, scoped, tag = 'output window, operand 0, single buffered']
    #allocation4 [shape = 's32[1]{0}', space=sflag, size = 0x4, scoped, tag = 'scoped memory for tpu_custom_call.1']
    %11 = vsyncpa [#allocation4], 0
    // Predicated region
    $region2: #{tpu_custom_call.1} parent=1 // pred_check
      _
    $region3: #{tpu_custom_call.1} parent=1 // pred_check_branch
      %13 = sbr.rel (0) target = $region5
    $region4: #{tpu_custom_call.1} parent=1 // pred_region
      _
    $region5: #{tpu_custom_call.1} parent=1 // pred_fallthru
      _
    // Predicated region
    $region6: #{tpu_custom_call.1} parent=1 // pred_check
      _
    $region7: #{tpu_custom_call.1} parent=1 // pred_check_branch
      %15 = sbr.rel (0) target = $region9
    $region8: #{tpu_custom_call.1} parent=1 // pred_region
      _
    $region9: #{tpu_custom_call.1} parent=1 // pred_fallthru
      _
    // Predicated region
    $region10: #{tpu_custom_call.1} parent=1 // pred_check
      _
    $region11: #{tpu_custom_call.1} parent=1 // pred_check_branch
      %17 = sbr.rel (0) target = $region13
    $region12: #{tpu_custom_call.1} parent=1 // pred_region
      _
    $region13: #{tpu_custom_call.1} parent=1 // pred_fallthru
      _
    // Predicated region
    $region14: #{tpu_custom_call.1} parent=1 // pred_check
      _
    $region15: #{tpu_custom_call.1} parent=1 // pred_check_branch
      %19 = sbr.rel (0) target = $region17
    $region16: #{tpu_custom_call.1} parent=1 // pred_region
      _
    $region17: #{tpu_custom_call.1} parent=1 // pred_fallthru
      _
    // Predicated region
    $region18: #{tpu_custom_call.1} parent=1 // pred_check
      _
    $region19: #{tpu_custom_call.1} parent=1 // pred_check_branch
      %21 = sbr.rel (0) target = $region21
    $region20: #{tpu_custom_call.1} parent=1 // pred_region
      _
    $region21: #{tpu_custom_call.1} parent=1 // pred_fallthru
      _
    %v22 = vld [vmem:[%s0] sm:$0xff]
    %v23 = vld [vmem:[%s0 + $0x8] sm:$0xff]
    %v24 = vld [vmem:[%s0 + $0x10] sm:$0xff]
    %v25 = vld [vmem:[%s0 + $0x18] sm:$0xff]
    %v26 = vld [vmem:[%s0 + $0x20] sm:$0xff]
    %v27 = vld [vmem:[%s0 + $0x28] sm:$0xff]
    %v28 = vld [vmem:[%s0 + $0x30] sm:$0xff]
    %v29 = vld [vmem:[%s0 + $0x38] sm:$0xff]
    %v30 = vld [vmem:[%s3] sm:$0xff]
    %v31 = vld [vmem:[%s3 + $0x8] sm:$0xff]
    %v32 = vld [vmem:[%s3 + $0x10] sm:$0xff]
    %v33 = vld [vmem:[%s3 + $0x18] sm:$0xff]
    %s34 = sld [smem:[#allocation2]]
    %v35 = vstv %s34
    %vm36 = vcmask 261120
    %v38 = vsel %vm36, %v22, 0
    %v41 = vsel %vm36, %v23, 0
    %v44 = vsel %vm36, %v24, 0
    %v47 = vsel %vm36, %v25, 0
    %v50 = vsel %vm36, %v26, 0
    %v53 = vsel %vm36, %v27, 0
    %v56 = vsel %vm36, %v28, 0
    %v59 = vsel %vm36, %v29, 0
    %61 = vmatprep.subr.mxu0 0.0
    %62 = vmatpush1.msra.mxu0 0.0
    %63 = vmatprep.subr.mxu0 0.0
    %64 = vmatpush1.msra.mxu0 0.0
    %65 = vmatprep.subr.mxu0 0.0
    %66 = vmatpush1.msra.mxu0 0.0
    %67 = vmatprep.subr.mxu0 0.0
    %68 = vmatpush1.msra.mxu0 0.0
    %69 = vmatprep.subr.mxu0 0.0
    %70 = vmatpush1.msra.mxu0 0.0
    %71 = vmatprep.subr.mxu0 0.0
    %72 = vmatpush1.msra.mxu0 0.0
    %73 = vmatprep.subr.mxu0 0.0
    %74 = vmatpush1.msra.mxu0 0.0
    %75 = vmatprep.subr.mxu0 0.0
    %76 = vmatpush1.msra.mxu0 0.0
    %77 = vmatprep.subr.mxu0 0.0
    %78 = vmatpush1.msra.mxu0 0.0
    %79 = vmatprep.subr.mxu0 0.0
    %80 = vmatpush1.msra.mxu0 0.0
    %81 = vmatprep.subr.mxu0 0.0
    %82 = vmatpush1.msra.mxu0 0.0
    %83 = vmatprep.subr.mxu0 0.0
    %84 = vmatpush1.msra.mxu0 0.0
    %85 = vmatprep.subr.mxu0 0.0
    %86 = vmatpush1.msra.mxu0 %v33
    %87 = vmatprep.subr.mxu0 0.0
    %88 = vmatpush1.msra.mxu0 %v32
    %89 = vmatprep.subr.mxu0 0.0
    %90 = vmatpush1.msra.mxu0 %v31
    %91 = vmatprep.subr.mxu0 0.0
    %92 = vmatpush1.msra.mxu0 %v30
    %93 = vmatprep.subr.mxu0 0.0
    %94 = vmatpush2.msra.mxu0 0.0
    %95 = vmatprep.subr.mxu0 0.0
    %96 = vmatpush2.msra.mxu0 0.0
    %97 = vmatprep.subr.mxu0 0.0
    %98 = vmatpush2.msra.mxu0 0.0
    %99 = vmatprep.subr.mxu0 0.0
    %100 = vmatpush2.msra.mxu0 0.0
    %101 = vmatprep.subr.mxu0 0.0
    %102 = vmatpush2.msra.mxu0 0.0
    %103 = vmatprep.subr.mxu0 0.0
    %104 = vmatpush2.msra.mxu0 0.0
    %105 = vmatprep.subr.mxu0 0.0
    %106 = vmatpush2.msra.mxu0 0.0
    %107 = vmatprep.subr.mxu0 0.0
    %108 = vmatpush2.msra.mxu0 0.0
    %109 = vmatprep.subr.mxu0 0.0
    %110 = vmatpush2.msra.mxu0 0.0
    %111 = vmatprep.subr.mxu0 0.0
    %112 = vmatpush2.msra.mxu0 0.0
    %113 = vmatprep.subr.mxu0 0.0
    %114 = vmatpush2.msra.mxu0 0.0
    %115 = vmatprep.subr.mxu0 0.0
    %116 = vmatpush2.msra.mxu0 0.0
    %117 = vmatprep.subr.mxu0 0.0
    %118 = vmatpush2.msra.mxu0 0.0
    %119 = vmatprep.subr.mxu0 0.0
    %120 = vmatpush2.msra.mxu0 0.0
    %121 = vmatprep.subr.mxu0 0.0
    %122 = vmatpush2.msra.mxu0 0.0
    %123 = vmatprep.subr.mxu0 0.0
    %124 = vmatpush2.msra.mxu0 0.0
    %125 = vmatprep.mubr.f32.mxu0 0.0
    %126 = vmatmul.mubr.f32.gmra.mxu0 %v38
    %v127 = vpop.f32.mrf.mxu0
    %v128 = vadd.f32 %v35, %v127
    %v129 = vpop.f32.mrf.mxu0
    %130 = vmatprep.mubr.f32.mxu0 0.0
    %131 = vmatmul.mubr.f32.gmra.mxu0 %v41
    %v132 = vpop.f32.mrf.mxu0
    %v133 = vadd.f32 %v35, %v132
    %v134 = vpop.f32.mrf.mxu0
    %135 = vmatprep.mubr.f32.mxu0 0.0
    %136 = vmatmul.mubr.f32.gmra.mxu0 %v44
    %v137 = vpop.f32.mrf.mxu0
    %v138 = vadd.f32 %v35, %v137
    %v139 = vpop.f32.mrf.mxu0
    %140 = vmatprep.mubr.f32.mxu0 0.0
    %141 = vmatmul.mubr.f32.gmra.mxu0 %v47
    %v142 = vpop.f32.mrf.mxu0
    %v143 = vadd.f32 %v35, %v142
    %v144 = vpop.f32.mrf.mxu0
    %145 = vmatprep.mubr.f32.mxu0 0.0
    %146 = vmatmul.mubr.f32.gmra.mxu0 %v50
    %v147 = vpop.f32.mrf.mxu0
    %v148 = vadd.f32 %v35, %v147
    %v149 = vpop.f32.mrf.mxu0
    %150 = vmatprep.mubr.f32.mxu0 0.0
    %151 = vmatmul.mubr.f32.gmra.mxu0 %v53
    %v152 = vpop.f32.mrf.mxu0
    %v153 = vadd.f32 %v35, %v152
    %v154 = vpop.f32.mrf.mxu0
    %155 = vmatprep.mubr.f32.mxu0 0.0
    %156 = vmatmul.mubr.f32.gmra.mxu0 %v56
    %v157 = vpop.f32.mrf.mxu0
    %v158 = vadd.f32 %v35, %v157
    %v159 = vpop.f32.mrf.mxu0
    %160 = vmatprep.mubr.f32.mxu0 0.0
    %161 = vmatmul.mubr.f32.gmra.mxu0 %v59
    %v162 = vpop.f32.mrf.mxu0
    %v163 = vadd.f32 %v35, %v162
    %v164 = vpop.f32.mrf.mxu0
    %165 = vdwg.mxu0
    %v166 = vxor.u32 %v128, 2147483648
    %v167 = vxor.u32 %v133, 2147483648
    %v168 = vxor.u32 %v138, 2147483648
    %v169 = vxor.u32 %v143, 2147483648
    %v170 = vxor.u32 %v148, 2147483648
    %v171 = vxor.u32 %v153, 2147483648
    %v172 = vxor.u32 %v158, 2147483648
    %v173 = vxor.u32 %v163, 2147483648
    %v174 = vmul.f32 %v166, 1.442695
    %v175 = vpow.pop %v174
    %v176 = vmul.f32 %v167, 1.442695
    %v177 = vpow.pop %v176
    %v178 = vmul.f32 %v168, 1.442695
    %v179 = vpow.pop %v178
    %v180 = vmul.f32 %v169, 1.442695
    %v181 = vpow.pop %v180
    %v182 = vmul.f32 %v170, 1.442695
    %v183 = vpow.pop %v182
    %v184 = vmul.f32 %v171, 1.442695
    %v185 = vpow.pop %v184
    %v186 = vmul.f32 %v172, 1.442695
    %v187 = vpow.pop %v186
    %v188 = vmul.f32 %v173, 1.442695
    %v189 = vpow.pop %v188
    %v190 = vadd.f32 %v175, 1.0
    %v191 = vadd.f32 %v177, 1.0
    %v192 = vadd.f32 %v179, 1.0
    %v193 = vadd.f32 %v181, 1.0
    %v194 = vadd.f32 %v183, 1.0
    %v195 = vadd.f32 %v185, 1.0
    %v196 = vadd.f32 %v187, 1.0
    %v197 = vadd.f32 %v189, 1.0
    %v198 = vrcp.pop %v190
    %v199 = vmul.f32 1.0, %v198
    %v200 = vrcp.pop %v191
    %v201 = vmul.f32 1.0, %v200
    %v202 = vrcp.pop %v192
    %v203 = vmul.f32 1.0, %v202
    %v204 = vrcp.pop %v193
    %v205 = vmul.f32 1.0, %v204
    %v206 = vrcp.pop %v194
    %v207 = vmul.f32 1.0, %v206
    %v208 = vrcp.pop %v195
    %v209 = vmul.f32 1.0, %v208
    %v210 = vrcp.pop %v196
    %v211 = vmul.f32 1.0, %v210
    %v212 = vrcp.pop %v197
    %v213 = vmul.f32 1.0, %v212
    %215 = vset.pattern.permute.xlu0 0
    %216 = vperm.xlu0 %215, %v199
    %v217 = vpop.permute.xlu0 %216
    %220 = vset.pattern.permute.xlu0 0
    %221 = vperm.xlu0 %220, %v201
    %v222 = vpop.permute.xlu0 %221
    %225 = vset.pattern.permute.xlu0 0
    %226 = vperm.xlu0 %225, %v203
    %v227 = vpop.permute.xlu0 %226
    %230 = vset.pattern.permute.xlu0 0
    %231 = vperm.xlu0 %230, %v205
    %v232 = vpop.permute.xlu0 %231
    %235 = vset.pattern.permute.xlu0 0
    %236 = vperm.xlu0 %235, %v207
    %v237 = vpop.permute.xlu0 %236
    %240 = vset.pattern.permute.xlu0 0
    %241 = vperm.xlu0 %240, %v209
    %v242 = vpop.permute.xlu0 %241
    %245 = vset.pattern.permute.xlu0 0
    %246 = vperm.xlu0 %245, %v211
    %v247 = vpop.permute.xlu0 %246
    %250 = vset.pattern.permute.xlu0 0
    %251 = vperm.xlu0 %250, %v213
    %v252 = vpop.permute.xlu0 %251
    %v254 = vmul.f32 %v22, %v217
    %v255 = vmul.f32 %v23, %v222
    %v256 = vmul.f32 %v24, %v227
    %v257 = vmul.f32 %v25, %v232
    %v258 = vmul.f32 %v26, %v237
    %v259 = vmul.f32 %v27, %v242
    %v260 = vmul.f32 %v28, %v247
    %v261 = vmul.f32 %v29, %v252
    %v262 = vsel %vm36, %v254, 0.0
    %v263 = vrot.slane %v262, 4
    %v264 = vadd.f32 %v262, %v263
    %v265 = vrot.slane %v264, 2
    %v266 = vadd.f32 %v264, %v265
    %v267 = vrot.slane %v266, 1
    %v268 = vadd.f32 %v266, %v267
    %v269 = vsel %vm36, %v255, 0.0
    %v270 = vrot.slane %v269, 4
    %v271 = vadd.f32 %v269, %v270
    %v272 = vrot.slane %v271, 2
    %v273 = vadd.f32 %v271, %v272
    %v274 = vrot.slane %v273, 1
    %v275 = vadd.f32 %v273, %v274
    %v276 = vsel %vm36, %v256, 0.0
    %v277 = vrot.slane %v276, 4
    %v278 = vadd.f32 %v276, %v277
    %v279 = vrot.slane %v278, 2
    %v280 = vadd.f32 %v278, %v279
    %v281 = vrot.slane %v280, 1
    %v282 = vadd.f32 %v280, %v281
    %v283 = vsel %vm36, %v257, 0.0
    %v284 = vrot.slane %v283, 4
    %v285 = vadd.f32 %v283, %v284
    %v286 = vrot.slane %v285, 2
    %v287 = vadd.f32 %v285, %v286
    %v288 = vrot.slane %v287, 1
    %v289 = vadd.f32 %v287, %v288
    %v290 = vsel %vm36, %v258, 0.0
    %v291 = vrot.slane %v290, 4
    %v292 = vadd.f32 %v290, %v291
    %v293 = vrot.slane %v292, 2
    %v294 = vadd.f32 %v292, %v293
    %v295 = vrot.slane %v294, 1
    %v296 = vadd.f32 %v294, %v295
    %v297 = vsel %vm36, %v259, 0.0
    %v298 = vrot.slane %v297, 4
    %v299 = vadd.f32 %v297, %v298
    %v300 = vrot.slane %v299, 2
    %v301 = vadd.f32 %v299, %v300
    %v302 = vrot.slane %v301, 1
    %v303 = vadd.f32 %v301, %v302
    %v304 = vsel %vm36, %v260, 0.0
    %v305 = vrot.slane %v304, 4
    %v306 = vadd.f32 %v304, %v305
    %v307 = vrot.slane %v306, 2
    %v308 = vadd.f32 %v306, %v307
    %v309 = vrot.slane %v308, 1
    %v310 = vadd.f32 %v308, %v309
    %v311 = vsel %vm36, %v261, 0.0
    %v312 = vrot.slane %v311, 4
    %v313 = vadd.f32 %v311, %v312
    %v314 = vrot.slane %v313, 2
    %v315 = vadd.f32 %v313, %v314
    %v316 = vrot.slane %v315, 1
    %v317 = vadd.f32 %v315, %v316
    %vm318 = vcmask 7168
    %v319 = vsel %vm318, %v199, 0.0
    %v320 = vrot.slane %v319, 4
    %v321 = vadd.f32 %v319, %v320
    %v322 = vrot.slane %v321, 2
    %v323 = vadd.f32 %v321, %v322
    %v324 = vrot.slane %v323, 1
    %v325 = vadd.f32 %v323, %v324
    %v326 = vsel %vm318, %v201, 0.0
    %v327 = vrot.slane %v326, 4
    %v328 = vadd.f32 %v326, %v327
    %v329 = vrot.slane %v328, 2
    %v330 = vadd.f32 %v328, %v329
    %v331 = vrot.slane %v330, 1
    %v332 = vadd.f32 %v330, %v331
    %v333 = vsel %vm318, %v203, 0.0
    %v334 = vrot.slane %v333, 4
    %v335 = vadd.f32 %v333, %v334
    %v336 = vrot.slane %v335, 2
    %v337 = vadd.f32 %v335, %v336
    %v338 = vrot.slane %v337, 1
    %v339 = vadd.f32 %v337, %v338
    %v340 = vsel %vm318, %v205, 0.0
    %v341 = vrot.slane %v340, 4
    %v342 = vadd.f32 %v340, %v341
    %v343 = vrot.slane %v342, 2
    %v344 = vadd.f32 %v342, %v343
    %v345 = vrot.slane %v344, 1
    %v346 = vadd.f32 %v344, %v345
    %v347 = vsel %vm318, %v207, 0.0
    %v348 = vrot.slane %v347, 4
    %v349 = vadd.f32 %v347, %v348
    %v350 = vrot.slane %v349, 2
    %v351 = vadd.f32 %v349, %v350
    %v352 = vrot.slane %v351, 1
    %v353 = vadd.f32 %v351, %v352
    %v354 = vsel %vm318, %v209, 0.0
    %v355 = vrot.slane %v354, 4
    %v356 = vadd.f32 %v354, %v355
    %v357 = vrot.slane %v356, 2
    %v358 = vadd.f32 %v356, %v357
    %v359 = vrot.slane %v358, 1
    %v360 = vadd.f32 %v358, %v359
    %v361 = vsel %vm318, %v211, 0.0
    %v362 = vrot.slane %v361, 4
    %v363 = vadd.f32 %v361, %v362
    %v364 = vrot.slane %v363, 2
    %v365 = vadd.f32 %v363, %v364
    %v366 = vrot.slane %v365, 1
    %v367 = vadd.f32 %v365, %v366
    %v368 = vsel %vm318, %v213, 0.0
    %v369 = vrot.slane %v368, 4
    %v370 = vadd.f32 %v368, %v369
    %v371 = vrot.slane %v370, 2
    %v372 = vadd.f32 %v370, %v371
    %v373 = vrot.slane %v372, 1
    %v374 = vadd.f32 %v372, %v373
    %v375 = vld [vmem:[%s1] sm:$0xff]
    %v376 = vld [vmem:[%s1 + $0x8] sm:$0xff]
    %v377 = vld [vmem:[%s1 + $0x10] sm:$0xff]
    %v378 = vld [vmem:[%s1 + $0x18] sm:$0xff]
    %v379 = vld [vmem:[%s2] sm:$0x1]
    %381 = vset.pattern.permute.xlu0 0
    %382 = vperm.xlu0 %381, %v325
    %v383 = vpop.permute.xlu0 %382
    %386 = vset.pattern.permute.xlu0 0
    %387 = vperm.xlu0 %386, %v332
    %v388 = vpop.permute.xlu0 %387
    %391 = vset.pattern.permute.xlu0 0
    %392 = vperm.xlu0 %391, %v339
    %v393 = vpop.permute.xlu0 %392
    %396 = vset.pattern.permute.xlu0 0
    %397 = vperm.xlu0 %396, %v346
    %v398 = vpop.permute.xlu0 %397
    %401 = vset.pattern.permute.xlu0 0
    %402 = vperm.xlu0 %401, %v353
    %v403 = vpop.permute.xlu0 %402
    %406 = vset.pattern.permute.xlu0 0
    %407 = vperm.xlu0 %406, %v360
    %v408 = vpop.permute.xlu0 %407
    %411 = vset.pattern.permute.xlu0 0
    %412 = vperm.xlu0 %411, %v367
    %v413 = vpop.permute.xlu0 %412
    %416 = vset.pattern.permute.xlu0 0
    %417 = vperm.xlu0 %416, %v374
    %v418 = vpop.permute.xlu0 %417
    %v421 = vlaneseq
    %v422 = vshrl.u32 %v421, 7
    %v423 = vsub.s32 0, %v422
    %v424 = vrot.slane %v379, %v423
    %v426 = vmul.f32 %v383, %v424
    %v427 = vmul.f32 %v388, %v424
    %v428 = vmul.f32 %v393, %v424
    %v429 = vmul.f32 %v398, %v424
    %v430 = vmul.f32 %v403, %v424
    %v431 = vmul.f32 %v408, %v424
    %v432 = vmul.f32 %v413, %v424
    %v433 = vmul.f32 %v418, %v424
    %vm442 = vcmask 1041409
    %v443 = vsel %vm442, %v275, %v268
    %vm444 = vcmask 1042434
    %v445 = vsel %vm444, %v282, %v443
    %vm446 = vcmask 1043459
    %v447 = vsel %vm446, %v289, %v445
    %vm448 = vcmask 1044484
    %v449 = vsel %vm448, %v296, %v447
    %vm450 = vcmask 1045509
    %v451 = vsel %vm450, %v303, %v449
    %vm452 = vcmask 1046534
    %v453 = vsel %vm452, %v310, %v451
    %vm454 = vcmask 1047559
    %v455 = vsel %vm454, %v317, %v453
    %v464 = vrot.slane %v427, 7
    %v465 = vsel %vm442, %v464, %v426
    %v466 = vrot.slane %v428, 6
    %v467 = vsel %vm444, %v466, %v465
    %v468 = vrot.slane %v429, 5
    %v469 = vsel %vm446, %v468, %v467
    %v470 = vrot.slane %v430, 4
    %v471 = vsel %vm448, %v470, %v469
    %v472 = vrot.slane %v431, 3
    %v473 = vsel %vm450, %v472, %v471
    %v474 = vrot.slane %v432, 2
    %v475 = vsel %vm452, %v474, %v473
    %v476 = vrot.slane %v433, 1
    %v477 = vsel %vm454, %v476, %v475
    %v479 = vsel %vm36, %v455, 0
    %481 = vmatprep.subr.mxu0 0.0
    %482 = vmatpush1.msra.mxu0 0.0
    %483 = vmatprep.subr.mxu0 0.0
    %484 = vmatpush1.msra.mxu0 0.0
    %485 = vmatprep.subr.mxu0 0.0
    %486 = vmatpush1.msra.mxu0 0.0
    %487 = vmatprep.subr.mxu0 0.0
    %488 = vmatpush1.msra.mxu0 0.0
    %489 = vmatprep.subr.mxu0 0.0
    %490 = vmatpush1.msra.mxu0 0.0
    %491 = vmatprep.subr.mxu0 0.0
    %492 = vmatpush1.msra.mxu0 0.0
    %493 = vmatprep.subr.mxu0 0.0
    %494 = vmatpush1.msra.mxu0 0.0
    %495 = vmatprep.subr.mxu0 0.0
    %496 = vmatpush1.msra.mxu0 0.0
    %497 = vmatprep.subr.mxu0 0.0
    %498 = vmatpush1.msra.mxu0 0.0
    %499 = vmatprep.subr.mxu0 0.0
    %500 = vmatpush1.msra.mxu0 0.0
    %501 = vmatprep.subr.mxu0 0.0
    %502 = vmatpush1.msra.mxu0 0.0
    %503 = vmatprep.subr.mxu0 0.0
    %504 = vmatpush1.msra.mxu0 0.0
    %505 = vmatprep.subr.mxu0 0.0
    %506 = vmatpush1.msra.mxu0 %v378
    %507 = vmatprep.subr.mxu0 0.0
    %508 = vmatpush1.msra.mxu0 %v377
    %509 = vmatprep.subr.mxu0 0.0
    %510 = vmatpush1.msra.mxu0 %v376
    %511 = vmatprep.subr.mxu0 0.0
    %512 = vmatpush1.msra.mxu0 %v375
    %513 = vmatprep.subr.mxu0 0.0
    %514 = vmatpush2.msra.mxu0 0.0
    %515 = vmatprep.subr.mxu0 0.0
    %516 = vmatpush2.msra.mxu0 0.0
    %517 = vmatprep.subr.mxu0 0.0
    %518 = vmatpush2.msra.mxu0 0.0
    %519 = vmatprep.subr.mxu0 0.0
    %520 = vmatpush2.msra.mxu0 0.0
    %521 = vmatprep.subr.mxu0 0.0
    %522 = vmatpush2.msra.mxu0 0.0
    %523 = vmatprep.subr.mxu0 0.0
    %524 = vmatpush2.msra.mxu0 0.0
    %525 = vmatprep.subr.mxu0 0.0
    %526 = vmatpush2.msra.mxu0 0.0
    %527 = vmatprep.subr.mxu0 0.0
    %528 = vmatpush2.msra.mxu0 0.0
    %529 = vmatprep.subr.mxu0 0.0
    %530 = vmatpush2.msra.mxu0 0.0
    %531 = vmatprep.subr.mxu0 0.0
    %532 = vmatpush2.msra.mxu0 0.0
    %533 = vmatprep.subr.mxu0 0.0
    %534 = vmatpush2.msra.mxu0 0.0
    %535 = vmatprep.subr.mxu0 0.0
    %536 = vmatpush2.msra.mxu0 0.0
    %537 = vmatprep.subr.mxu0 0.0
    %538 = vmatpush2.msra.mxu0 0.0
    %539 = vmatprep.subr.mxu0 0.0
    %540 = vmatpush2.msra.mxu0 0.0
    %541 = vmatprep.subr.mxu0 0.0
    %542 = vmatpush2.msra.mxu0 0.0
    %543 = vmatprep.subr.mxu0 0.0
    %544 = vmatpush2.msra.mxu0 0.0
    %545 = vmatprep.mubr.f32.mxu0 0.0
    %546 = vmatmul.mubr.f32.gmra.mxu0 %v479
    %v547 = vpop.f32.mrf.mxu0
    %v548 = vadd.f32 %v477, %v547
    %v549 = vpop.f32.mrf.mxu0
    %550 = vdwg.mxu0
    %551 = vst.msk [vmem:[#allocation3] sm:$0xff] %vm36, %v548
    // Predicated region
    $region22: #{tpu_custom_call.1} parent=1 // pred_check
      _
    $region23: #{tpu_custom_call.1} parent=1 // pred_check_branch
      %553 = sbr.rel (0) target = $region25
    $region24: #{tpu_custom_call.1} parent=1 // pred_region
      %s555 = ssub.s32 128, 128
      %556 = vsyncadd [#allocation4], %s555
      %s558 = sshll.u32 [#allocation3], 4
      %s559 = int_to_ptr.vmem [resolvable:$true] %s558
      %561 = dma.vmem_to_hbm [thread:$0]  %s559, 128, %s5, [#allocation4]
    $region25: #{tpu_custom_call.1} parent=1 // pred_fallthru
      _
    // Predicated region
    $region26: #{tpu_custom_call.1} parent=1 // pred_check
      _
    $region27: #{tpu_custom_call.1} parent=1 // pred_check_branch
      %563 = sbr.rel (0) target = $region29
    $region28: #{tpu_custom_call.1} parent=1 // pred_region
      %564 = dma.done [#allocation4], 128
    $region29: #{tpu_custom_call.1} parent=1 // pred_fallthru
      _
    %565 = vsyncpa [#allocation4], 1

</llo_original>
